<compile_context>
chip_gen: v6e
topology: v6e:2x2x1
jax: 0.10.0
libtpu: 0.0.40
codegen_flags: <defaults>
</compile_context>

<pallas_src>
import functools

import jax
import jax.numpy as jnp
from jax.experimental import pallas as pl
from jax.experimental.pallas import tpu as pltpu


def _round_up(x, m):
    return (x + m - 1) // m * m


def _cdiv(a, b):
    return (a + b - 1) // b


def _patch_embed_kernel(p_ref, w_ref, b_ref, o_ref):
    # p_ref: (TM, Kp)  tile of flattened patches (streamed)
    # w_ref: (Kp, Np)  projection weights (resident, single-buffered)
    # b_ref: (1, Np)   bias, f32 (resident, single-buffered)
    # o_ref: (TM, Np)  output tile
    acc = jnp.dot(p_ref[...], w_ref[...], preferred_element_type=jnp.float32)
    o_ref[...] = (acc + b_ref[...].astype(jnp.float32)).astype(o_ref.dtype)


def _vmem_budget():
    """Generation-aware sizing: (compiler vmem limit, tile-selection budget)."""
    try:
        phys = int(pltpu.get_tpu_info().vmem_capacity_bytes)  # 128 MiB v5e/v6e, 64 MiB v7x
    except Exception:
        phys = 64 * 1024 * 1024  # conservative fallback (v7x per-TC VMEM)
    limit = int(0.80 * phys)     # headroom for pipelining buffers / semaphores / scratch
    budget = int(0.70 * limit)   # what tile selection may plan against
    return limit, budget


def _choose_tiles(M, Kp, Np, in_bytes, out_bytes, row_align, budget_bytes, tm_cap):
    """Pick (tm, n_tiles) accounting for every resident VMEM buffer."""
    resident = Kp * Np * in_bytes + Np * 4          # single-buffered weight + f32 bias

    def fits(tm):
        streamed = 2 * tm * Kp * in_bytes + 2 * tm * Np * out_bytes  # double-buffered tiles
        acc = tm * Np * 4                                            # f32 accumulator temp
        return resident + streamed + acc <= budget_bytes

    tm = min(_round_up(tm_cap, row_align), _round_up(M, row_align))
    while tm > row_align and not fits(tm):
        tm = max(row_align, _round_up(tm // 2, row_align))

    n_tiles = _cdiv(M, tm)
    if n_tiles > 1:
        # Even tile count keeps both v7x TensorCores busy under "parallel" megacore
        # sharding (harmless on 1-TC chips), and rebalancing bounds zero-row padding
        # waste (tm only needs row alignment, not a power of two).
        if n_tiles % 2 == 1:
            n_tiles += 1
        tm = _round_up(_cdiv(M, n_tiles), row_align)
        n_tiles = _cdiv(M, tm)
    return tm, n_tiles


@functools.partial(jax.jit, static_argnames=("patch_size", "use_bf16", "tm_cap"))
def patch_embedding(x, weight, bias, *, patch_size, use_bf16=False, tm_cap=2048):
    """x: (B, C, H, W) NCHW.  weight: (dim_patch, C, P, P).  bias: (dim_patch,)."""
    B, C, H, W = x.shape
    P = patch_size
    assert H % P == 0 and W % P == 0
    gh, gw = H // P, W // P
    num_patches = gh * gw
    dim_patch = weight.shape[0]
    assert weight.shape == (dim_patch, C, P, P)

    out_dtype = x.dtype
    compute_dtype = jnp.bfloat16 if use_bf16 else x.dtype
    in_bytes = jnp.dtype(compute_dtype).itemsize
    out_bytes = jnp.dtype(out_dtype).itemsize
    row_align = 16 if in_bytes == 2 else 8   # bf16 sublane packing

    # Patchify (layout glue) in JAX; (C, ph, pw) flatten order matches Conv2d weights.
    # TODO(synk): verify with an xprof trace that allow_input_fusion really folds this
    # transpose into the kernel's input DMA; otherwise move extraction in-kernel via
    # pl.ANY + pltpu.make_async_copy to avoid an extra HBM round trip of the activation.
    patches = x.reshape(B, C, gh, P, gw, P)
    patches = patches.transpose(0, 2, 4, 1, 3, 5).reshape(B * num_patches, C * P * P)
    w_flat = weight.reshape(dim_patch, C * P * P).T          # (K, N)

    patches = patches.astype(compute_dtype)
    w_flat = w_flat.astype(compute_dtype)

    M, K = patches.shape
    N = dim_patch

    # Lane-dense padding: K (LHS lanes / RHS sublanes) and N (output lanes) -> 128 multiples.
    Kp = _round_up(K, 128)
    Np = _round_up(N, 128)
    if Kp != K:
        patches = jnp.pad(patches, ((0, 0), (0, Kp - K)))
        w_flat = jnp.pad(w_flat, ((0, Kp - K), (0, 0)))
    if Np != N:
        w_flat = jnp.pad(w_flat, ((0, 0), (0, Np - N)))
        b_row = jnp.pad(bias, (0, Np - N)).reshape(1, Np)
    else:
        b_row = bias.reshape(1, Np)
    b_row = b_row.astype(jnp.float32)                        # f32 bias add always

    vmem_limit, budget = _vmem_budget()
    tm, n_tiles = _choose_tiles(M, Kp, Np, in_bytes, out_bytes, row_align, budget, tm_cap)
    Mp = tm * n_tiles
    if Mp != M:
        patches = jnp.pad(patches, ((0, Mp - M), (0, 0)))

    if n_tiles == 1:
        # Tiny-problem short-circuit: single full-block call, no grid/pipeline machinery.
        out = pl.pallas_call(
            _patch_embed_kernel,
            out_shape=jax.ShapeDtypeStruct((Mp, Np), out_dtype),
            compiler_params=pltpu.CompilerParams(vmem_limit_bytes=vmem_limit),
        )(patches, w_flat, b_row)
    else:
        out = pl.pallas_call(
            _patch_embed_kernel,
            out_shape=jax.ShapeDtypeStruct((Mp, Np), out_dtype),
            grid_spec=pltpu.PrefetchScalarGridSpec(
                num_scalar_prefetch=0,
                grid=(n_tiles,),
                in_specs=[
                    # Streamed patch tiles (double-buffered by default).
                    pl.BlockSpec((tm, Kp), lambda i: (i, 0)),
                    # Resident weight/bias: constant index_map -> single buffer is enough.
                    pl.BlockSpec((Kp, Np), lambda i: (0, 0),
                                 pipeline_mode=pl.Buffered(1)),
                    pl.BlockSpec((1, Np), lambda i: (0, 0),
                                 pipeline_mode=pl.Buffered(1)),
                ],
                out_specs=pl.BlockSpec((tm, Np), lambda i: (i, 0)),
            ),
            compiler_params=pltpu.CompilerParams(
                dimension_semantics=("parallel",),            # megacore sharding on v7x
                vmem_limit_bytes=vmem_limit,
                allow_input_fusion=[True, False, False],      # fold patchify into input DMA
            ),
            cost_estimate=pl.CostEstimate(
                flops=2 * Mp * Kp * Np,
                bytes_accessed=(Mp * Kp + Kp * Np) * in_bytes + Mp * Np * out_bytes,
                transcendentals=0,
            ),
        )(patches, w_flat, b_row)

    # Slice off padding, then (B*num_patches, dim_patch) -> (B, num_patches, dim_patch).
    out = out[:M, :N].reshape(B, num_patches, dim_patch)
    # TODO(synk): norm_layer defaults to nn.Identity in the module; a LayerNorm variant
    # would be fused here as an extra kernel epilogue if configured.
    return out


if __name__ == "__main__":
    # Small shapes consistent with the module: image_size=16, in_channels=4, patch_size=4.
    B, C, H, W = 2, 4, 16, 16
    P = 4
    dim_patch = C * P * P  # 64

    key = jax.random.PRNGKey(0)
    kx, kw, kb = jax.random.split(key, 3)
    x = jax.random.normal(kx, (B, C, H, W), dtype=jnp.float32)
    weight = jax.random.normal(kw, (dim_patch, C, P, P), dtype=jnp.float32) * 0.02
    bias = jax.random.normal(kb, (dim_patch,), dtype=jnp.float32) * 0.02

    # Plain-JAX reference (same semantics as the PyTorch Conv2d patchify).
    ref = jax.lax.conv_general_dilated(
        x, weight, window_strides=(P, P), padding="VALID",
        dimension_numbers=("NCHW", "OIHW", "NCHW"),
    ) + bias.reshape(1, dim_patch, 1, 1)
    ref = ref.reshape(B, dim_patch, -1).transpose(0, 2, 1)

    # 1) Default f32 path (fits one tile -> single-block short-circuit), exact Conv2d numerics.
    out = patch_embedding(x, weight, bias, patch_size=P)
    jax.block_until_ready(out)
    assert out.shape == (B, (H // P) * (W // P), dim_patch)
    assert jnp.allclose(out, ref, atol=1e-4, rtol=1e-4)

    # 2) Force the tiled/pipelined grid path (tm_cap=16 -> 2 tiles) to exercise the real hot path.
    out_grid = patch_embedding(x, weight, bias, patch_size=P, tm_cap=16)
    jax.block_until_ready(out_grid)
    assert jnp.allclose(out_grid, ref, atol=1e-4, rtol=1e-4)

    # 3) bf16 fast path on the grid path (inputs quantized to bf16 -> loose tolerance).
    out_bf16 = patch_embedding(x, weight, bias, patch_size=P, use_bf16=True, tm_cap=16)
    jax.block_until_ready(out_bf16)
    assert jnp.allclose(out_bf16, ref, atol=5e-2, rtol=5e-2)

    print("KERNEL_OK")
</pallas_src>

<mosaic_0001>
module attributes {stable_mosaic.version = 11 : i64} {
  func.func @_patch_embed_kernel(%arg0: memref<32x128xf32, #tpu.memory_space<vmem>>, %arg1: memref<128x128xf32, #tpu.memory_space<vmem>>, %arg2: memref<1x128xf32, #tpu.memory_space<vmem>>, %arg3: memref<32x128xf32, #tpu.memory_space<vmem>>) attributes {dimension_semantics = [], scalar_prefetch = 0 : i64, scratch_operands = 0 : i64, tpu.core_type = #tpu.core_type<tc>} {
    %c0 = arith.constant 0 : index
    %c0_0 = arith.constant 0 : index
    %0 = vector.load %arg0[%c0, %c0_0] : memref<32x128xf32, #tpu.memory_space<vmem>>, vector<32x128xf32>
    %c0_1 = arith.constant 0 : index
    %c0_2 = arith.constant 0 : index
    %1 = vector.load %arg1[%c0_1, %c0_2] : memref<128x128xf32, #tpu.memory_space<vmem>>, vector<128x128xf32>
    %cst = arith.constant dense<0.000000e+00> : vector<32x128xf32>
    %2 = tpu.matmul %0, %1, %cst {dimension_numbers = #tpu.dot_dimension_numbers<[1], [0], [0], [1], [0, 0, 1, 1], [], []>} : vector<32x128xf32>, vector<128x128xf32>, vector<32x128xf32> -> vector<32x128xf32>
    %c0_3 = arith.constant 0 : index
    %c0_4 = arith.constant 0 : index
    %3 = vector.load %arg2[%c0_3, %c0_4] : memref<1x128xf32, #tpu.memory_space<vmem>>, vector<1x128xf32>
    %4 = vector.broadcast %3 : vector<1x128xf32> to vector<32x128xf32>
    %5 = arith.addf %2, %4 : vector<32x128xf32>
    %c0_5 = arith.constant 0 : index
    %c0_6 = arith.constant 0 : index
    %6 = vector.load %arg3[%c0_5, %c0_6] : memref<32x128xf32, #tpu.memory_space<vmem>>, vector<32x128xf32>
    tpu.vector_store %arg3[%c0_5, %c0_6], %5 {strides = array<i32>} : memref<32x128xf32, #tpu.memory_space<vmem>>, vector<32x128xf32>,
    return
  }
}

</mosaic_0001>

<llo_original>
// kernel: patch_embedding.1
$region0: #{patch_embedding.1}
  #allocation0 [shape = 'u32[]', space=smem, size = 0x4, offset = 0x4, fixed_abs, tag = 'smem constant byte address 0x4 - core index']
  #allocation1 [shape = 'u32[144,128]{1,0:T(1,128)}', space=vmem, size = 0x12000, scoped, tag = 'internal scratch']
  %s0 = inlined_call_operand.vmem [shape: f32[32,128], index: 0, kind: input, shape index: {}]
  %s1 = inlined_call_operand.vmem [shape: f32[128,128], index: 1, kind: input, shape index: {}]
  %s2 = inlined_call_operand.vmem [shape: f32[1,128], index: 2, kind: input, shape index: {}]
  %s3 = inlined_call_operand.hbm [shape: f32[32,128], index: 3, kind: output, shape index: {}]
  %s4 = sld [smem:[#allocation0]]
  $region22: #{patch_embedding.1} parent=0
    _
  %s6 = ssub.s32 1, %s4
  %s7 = scalar_select 0, %s6, %s4
  $region1: #{patch_embedding.1} parent=0
    #allocation2 [shape = 'u8[16384]{0}', space=vmem, size = 0x4000, scoped, tag = 'output window, operand 0, single buffered']
    #allocation3 [shape = 's32[1]{0}', space=sflag, size = 0x4, scoped, tag = 'scoped memory for patch_embedding.1']
    %8 = vsyncpa [#allocation3], 0
    // Predicated region
    $region2: #{patch_embedding.1} parent=1 // pred_check
      _
    $region3: #{patch_embedding.1} parent=1 // pred_check_branch
      %10 = sbr.rel (0) target = $region5
    $region4: #{patch_embedding.1} parent=1 // pred_region
      _
    $region5: #{patch_embedding.1} parent=1 // pred_fallthru
      _
    // Predicated region
    $region6: #{patch_embedding.1} parent=1 // pred_check
      _
    $region7: #{patch_embedding.1} parent=1 // pred_check_branch
      %12 = sbr.rel (0) target = $region9
    $region8: #{patch_embedding.1} parent=1 // pred_region
      _
    $region9: #{patch_embedding.1} parent=1 // pred_fallthru
      _
    // Predicated region
    $region10: #{patch_embedding.1} parent=1 // pred_check
      _
    $region11: #{patch_embedding.1} parent=1 // pred_check_branch
      %14 = sbr.rel (0) target = $region13
    $region12: #{patch_embedding.1} parent=1 // pred_region
      _
    $region13: #{patch_embedding.1} parent=1 // pred_fallthru
      _
    %v15 = vld [vmem:[%s0] sm:$0xff]
    %v16 = vld [vmem:[%s0 + $0x8] sm:$0xff]
    %v17 = vld [vmem:[%s0 + $0x10] sm:$0xff]
    %v18 = vld [vmem:[%s0 + $0x18] sm:$0xff]
    %v19 = vld [vmem:[%s1] sm:$0xff]
    %v20 = vld [vmem:[%s1 + $0x8] sm:$0xff]
    %v21 = vld [vmem:[%s1 + $0x10] sm:$0xff]
    %v22 = vld [vmem:[%s1 + $0x18] sm:$0xff]
    %v23 = vld [vmem:[%s1 + $0x20] sm:$0xff]
    %v24 = vld [vmem:[%s1 + $0x28] sm:$0xff]
    %v25 = vld [vmem:[%s1 + $0x30] sm:$0xff]
    %v26 = vld [vmem:[%s1 + $0x38] sm:$0xff]
    %v27 = vld [vmem:[%s1 + $0x40] sm:$0xff]
    %v28 = vld [vmem:[%s1 + $0x48] sm:$0xff]
    %v29 = vld [vmem:[%s1 + $0x50] sm:$0xff]
    %v30 = vld [vmem:[%s1 + $0x58] sm:$0xff]
    %v31 = vld [vmem:[%s1 + $0x60] sm:$0xff]
    %v32 = vld [vmem:[%s1 + $0x68] sm:$0xff]
    %v33 = vld [vmem:[%s1 + $0x70] sm:$0xff]
    %v34 = vld [vmem:[%s1 + $0x78] sm:$0xff]
    %v35 = vld [vmem:[%s2] sm:$0x1]
    %v37 = vlaneseq
    %v38 = vshrl.u32 %v37, 7
    %v39 = vsub.s32 0, %v38
    %v40 = vrot.slane %v35, %v39
    %42 = vmatprep.subr.mxu0 0.0
    %43 = vmatpush1.msra.mxu0 %v34
    %44 = vmatprep.subr.mxu0 0.0
    %45 = vmatpush1.msra.mxu0 %v33
    %46 = vmatprep.subr.mxu0 0.0
    %47 = vmatpush1.msra.mxu0 %v32
    %48 = vmatprep.subr.mxu0 0.0
    %49 = vmatpush1.msra.mxu0 %v31
    %50 = vmatprep.subr.mxu0 0.0
    %51 = vmatpush1.msra.mxu0 %v30
    %52 = vmatprep.subr.mxu0 0.0
    %53 = vmatpush1.msra.mxu0 %v29
    %54 = vmatprep.subr.mxu0 0.0
    %55 = vmatpush1.msra.mxu0 %v28
    %56 = vmatprep.subr.mxu0 0.0
    %57 = vmatpush1.msra.mxu0 %v27
    %58 = vmatprep.subr.mxu0 0.0
    %59 = vmatpush1.msra.mxu0 %v26
    %60 = vmatprep.subr.mxu0 0.0
    %61 = vmatpush1.msra.mxu0 %v25
    %62 = vmatprep.subr.mxu0 0.0
    %63 = vmatpush1.msra.mxu0 %v24
    %64 = vmatprep.subr.mxu0 0.0
    %65 = vmatpush1.msra.mxu0 %v23
    %66 = vmatprep.subr.mxu0 0.0
    %67 = vmatpush1.msra.mxu0 %v22
    %68 = vmatprep.subr.mxu0 0.0
    %69 = vmatpush1.msra.mxu0 %v21
    %70 = vmatprep.subr.mxu0 0.0
    %71 = vmatpush1.msra.mxu0 %v20
    %72 = vmatprep.subr.mxu0 0.0
    %73 = vmatpush1.msra.mxu0 %v19
    %74 = vmatprep.subr.mxu0 0.0
    %75 = vmatpush2.msra.mxu0 0.0
    %76 = vmatprep.subr.mxu0 0.0
    %77 = vmatpush2.msra.mxu0 0.0
    %78 = vmatprep.subr.mxu0 0.0
    %79 = vmatpush2.msra.mxu0 0.0
    %80 = vmatprep.subr.mxu0 0.0
    %81 = vmatpush2.msra.mxu0 0.0
    %82 = vmatprep.subr.mxu0 0.0
    %83 = vmatpush2.msra.mxu0 0.0
    %84 = vmatprep.subr.mxu0 0.0
    %85 = vmatpush2.msra.mxu0 0.0
    %86 = vmatprep.subr.mxu0 0.0
    %87 = vmatpush2.msra.mxu0 0.0
    %88 = vmatprep.subr.mxu0 0.0
    %89 = vmatpush2.msra.mxu0 0.0
    %90 = vmatprep.subr.mxu0 0.0
    %91 = vmatpush2.msra.mxu0 0.0
    %92 = vmatprep.subr.mxu0 0.0
    %93 = vmatpush2.msra.mxu0 0.0
    %94 = vmatprep.subr.mxu0 0.0
    %95 = vmatpush2.msra.mxu0 0.0
    %96 = vmatprep.subr.mxu0 0.0
    %97 = vmatpush2.msra.mxu0 0.0
    %98 = vmatprep.subr.mxu0 0.0
    %99 = vmatpush2.msra.mxu0 0.0
    %100 = vmatprep.subr.mxu0 0.0
    %101 = vmatpush2.msra.mxu0 0.0
    %102 = vmatprep.subr.mxu0 0.0
    %103 = vmatpush2.msra.mxu0 0.0
    %104 = vmatprep.subr.mxu0 0.0
    %105 = vmatpush2.msra.mxu0 0.0
    %106 = vmatprep.mubr.f32.mxu0 0.0
    %107 = vmatmul.mubr.f32.gmra.mxu0 %v15
    %v108 = vpop.f32.mrf.mxu0
    %v109 = vadd.f32 %v40, %v108
    %v110 = vpop.f32.mrf.mxu0
    %111 = vmatprep.mubr.f32.mxu0 0.0
    %112 = vmatmul.mubr.f32.gmra.mxu0 %v16
    %v113 = vpop.f32.mrf.mxu0
    %v114 = vadd.f32 %v40, %v113
    %v115 = vpop.f32.mrf.mxu0
    %116 = vmatprep.mubr.f32.mxu0 0.0
    %117 = vmatmul.mubr.f32.gmra.mxu0 %v17
    %v118 = vpop.f32.mrf.mxu0
    %v119 = vadd.f32 %v40, %v118
    %v120 = vpop.f32.mrf.mxu0
    %121 = vmatprep.mubr.f32.mxu0 0.0
    %122 = vmatmul.mubr.f32.gmra.mxu0 %v18
    %v123 = vpop.f32.mrf.mxu0
    %v124 = vadd.f32 %v40, %v123
    %v125 = vpop.f32.mrf.mxu0
    %126 = vdwg.mxu0
    %127 = vst [vmem:[#allocation2] sm:$0xff] %v109
    %128 = vst [vmem:[#allocation2 + $0x8] sm:$0xff] %v114
    %129 = vst [vmem:[#allocation2 + $0x10] sm:$0xff] %v119
    %130 = vst [vmem:[#allocation2 + $0x18] sm:$0xff] %v124
    // Predicated region
    $region14: #{patch_embedding.1} parent=1 // pred_check
      _
    $region15: #{patch_embedding.1} parent=1 // pred_check_branch
      %132 = sbr.rel (0) target = $region17
    $region16: #{patch_embedding.1} parent=1 // pred_region
      %s134 = ssub.s32 512, 512
      %135 = vsyncadd [#allocation3], %s134
      %s136 = sshll.u32 [#allocation2], 4
      %s137 = int_to_ptr.vmem [resolvable:$true] %s136
      %142 = dma.vmem_to_hbm [thread:$0]  %s137, 512, %s3, [#allocation3], 128, 128, 8
    $region17: #{patch_embedding.1} parent=1 // pred_fallthru
      _
    // Predicated region
    $region18: #{patch_embedding.1} parent=1 // pred_check
      _
    $region19: #{patch_embedding.1} parent=1 // pred_check_branch
      %144 = sbr.rel (0) target = $region21
    $region20: #{patch_embedding.1} parent=1 // pred_region
      %145 = dma.done [#allocation3], 512
    $region21: #{patch_embedding.1} parent=1 // pred_fallthru
      _
    %146 = vsyncpa [#allocation3], 1

</llo_original>
